<compile_context>
chip_gen: v7x
topology: tpu7x:2x2x1
jax: 0.10.0
libtpu: 0.0.40
codegen_flags: <defaults>
</compile_context>

<pallas_src>
import jax
import jax.numpy as jnp
from jax.experimental import pallas as pl
from jax.experimental.pallas import tpu as pltpu


# ------------------------- NCHW path (module interface) -------------------------

def _scale_mul_nchw_kernel(scale_ref, x_ref, o_ref):
    # scale_ref: (NC, 1) full per-channel scale, resident once in VMEM
    # x_ref:     (tile_c, HW) channel block of the feature map
    tile_c = x_ref.shape[0]
    start = pl.multiple_of(pl.program_id(0) * tile_c, tile_c)
    o_ref[...] = x_ref[...] * scale_ref[pl.ds(start, tile_c), :]


def channel_scale_mul(scale, x, *, num_blocks=2):
    """scale: [N, C, 1, 1] (torch-broadcastable), x: [N, C, H, W] -> scale * x."""
    N, C, H, W = x.shape
    scale_b = jnp.broadcast_to(scale, (N, C, 1, 1))

    NC = N * C
    HW = H * W
    x2 = x.reshape(NC, HW)
    s2 = scale_b.reshape(NC, 1)

    # <=2 grid steps: two sublane-aligned channel blocks so v7x's two
    # TensorCores each take half; otherwise one full-array block.
    if num_blocks > 1 and NC % num_blocks == 0 and (NC // num_blocks) % 8 == 0:
        tile_c = NC // num_blocks
    else:
        tile_c = NC
    grid = (NC // tile_c,)

    out = pl.pallas_call(
        _scale_mul_nchw_kernel,
        out_shape=jax.ShapeDtypeStruct((NC, HW), x.dtype),
        grid_spec=pltpu.PrefetchScalarGridSpec(
            num_scalar_prefetch=0,
            grid=grid,
            in_specs=[
                # whole scale, constant block index -> single DMA, stays resident
                pl.BlockSpec((NC, 1), lambda i: (0, 0)),
                pl.BlockSpec((tile_c, HW), lambda i: (i, 0)),
            ],
            out_specs=pl.BlockSpec((tile_c, HW), lambda i: (i, 0)),
        ),
        compiler_params=pltpu.CompilerParams(
            dimension_semantics=("parallel",),
        ),
    )(s2, x2)

    return out.reshape(N, C, H, W)


# ------------------- NHWC (lane-dense) path, for channels-last callers -------------------

def _scale_mul_nhwc_kernel(scale_ref, x_ref, o_ref):
    # scale_ref: (1, tile_c) row; x_ref: (NHW, tile_c); broadcast over sublanes.
    # C on the lane axis (multiple of 128) -> unmasked full-width stores.
    o_ref[...] = x_ref[...] * scale_ref[...]


def channel_scale_mul_nhwc(scale, x_nhwc, *, num_blocks=2):
    """Lane-dense variant. scale: [1, C, 1, 1], x_nhwc: [N, H, W, C]."""
    N, H, W, C = x_nhwc.shape
    assert scale.shape[0] == 1, "NHWC fast path expects a batch-1 (per-channel) scale"
    NHW = N * H * W
    x2 = x_nhwc.reshape(NHW, C)
    s2 = scale.reshape(1, C)

    if num_blocks > 1 and C % num_blocks == 0 and (C // num_blocks) % 128 == 0:
        tile_c = C // num_blocks
    else:
        tile_c = C
    grid = (C // tile_c,)

    out = pl.pallas_call(
        _scale_mul_nhwc_kernel,
        out_shape=jax.ShapeDtypeStruct((NHW, C), x_nhwc.dtype),
        grid_spec=pltpu.PrefetchScalarGridSpec(
            num_scalar_prefetch=0,
            grid=grid,
            in_specs=[
                pl.BlockSpec((1, tile_c), lambda i: (0, i)),
                pl.BlockSpec((NHW, tile_c), lambda i: (0, i)),
            ],
            out_specs=pl.BlockSpec((NHW, tile_c), lambda i: (0, i)),
        ),
        compiler_params=pltpu.CompilerParams(
            dimension_semantics=("parallel",),
        ),
    )(s2, x2)

    return out.reshape(N, H, W, C)


if __name__ == "__main__":
    key = jax.random.PRNGKey(0)
    k1, k2 = jax.random.split(key)

    # shapes implied by the module's forward
    x101 = jax.random.normal(k1, (1, 512, 14, 14), dtype=jnp.float32)  # feature map
    x106 = jax.random.normal(k2, (1, 512, 1, 1), dtype=jnp.float32)    # per-channel scale

    # primary (module-interface, NCHW) path
    x107 = channel_scale_mul(x106, x101)
    x107 = jax.block_until_ready(x107)
    ref = x106 * x101
    assert x107.shape == (1, 512, 14, 14)
    assert jnp.allclose(x107, ref, atol=1e-6, rtol=1e-6)

    # lane-dense NHWC path (for callers that already have channels-last data)
    x_nhwc = jnp.transpose(x101, (0, 2, 3, 1))
    out_nhwc = channel_scale_mul_nhwc(x106, x_nhwc)
    out_nhwc = jax.block_until_ready(out_nhwc)
    ref_nhwc = jnp.transpose(ref, (0, 2, 3, 1))
    assert jnp.allclose(out_nhwc, ref_nhwc, atol=1e-6, rtol=1e-6)

    print("KERNEL_OK")
</pallas_src>

<mosaic_0001>
module attributes {stable_mosaic.version = 11 : i64} {
  func.func @_scale_mul_nchw_kernel(%arg0: i32, %arg1: memref<512x1xf32, #tpu.memory_space<vmem>>, %arg2: memref<256x196xf32, #tpu.memory_space<vmem>>, %arg3: memref<256x196xf32, #tpu.memory_space<vmem>>) attributes {dimension_semantics = [#tpu.dimension_semantics<parallel>], iteration_bounds = array<i64: 2>, scalar_prefetch = 0 : i64, scratch_operands = 0 : i64, tpu.core_type = #tpu.core_type<tc>, window_params = [{pipeline_mode = #tpu.pipeline_mode<synchronous>, transform_indices = @transform_0, window_bounds = array<i64: 512, 1>}, {transform_indices = @transform_1, window_bounds = array<i64: 256, 196>}, {transform_indices = @transform_2, window_bounds = array<i64: 256, 196>}]} {
    %c256_i32 = arith.constant 256 : i32
    %0 = arith.muli %arg0, %c256_i32 : i32
    %1 = tpu.assume_multiple %0, 256 : i32
    %c0 = arith.constant 0 : index
    %c0_0 = arith.constant 0 : index
    %2 = vector.load %arg2[%c0, %c0_0] : memref<256x196xf32, #tpu.memory_space<vmem>>, vector<256x196xf32>
    %3 = arith.index_cast %1 : i32 to index
    %c0_1 = arith.constant 0 : index
    %4 = vector.load %arg1[%3, %c0_1] : memref<512x1xf32, #tpu.memory_space<vmem>>, vector<256x1xf32>
    %5 = vector.broadcast %4 : vector<256x1xf32> to vector<256x196xf32>
    %6 = arith.mulf %2, %5 : vector<256x196xf32>
    %c0_2 = arith.constant 0 : index
    %c0_3 = arith.constant 0 : index
    %7 = vector.load %arg3[%c0_2, %c0_3] : memref<256x196xf32, #tpu.memory_space<vmem>>, vector<256x196xf32>
    tpu.vector_store %arg3[%c0_2, %c0_3], %6 {strides = array<i32>} : memref<256x196xf32, #tpu.memory_space<vmem>>, vector<256x196xf32>,
    return
  }
  func.func @transform_0(%arg0: i32) -> (i32, i32) {
    %c0_i32 = arith.constant 0 : i32
    %c0_i32_0 = arith.constant 0 : i32
    %c0_i32_1 = arith.constant 0 : i32
    return %c0_i32, %c0_i32_0 : i32, i32
  }
  func.func @transform_1(%arg0: i32) -> (i32, i32) {
    %c0_i32 = arith.constant 0 : i32
    %c0_i32_0 = arith.constant 0 : i32
    return %arg0, %c0_i32 : i32, i32
  }
  func.func @transform_2(%arg0: i32) -> (i32, i32) {
    %c0_i32 = arith.constant 0 : i32
    %c0_i32_0 = arith.constant 0 : i32
    return %arg0, %c0_i32 : i32, i32
  }
}

</mosaic_0001>

<llo_original>
// kernel: tpu_custom_call.1
$region0: #{tpu_custom_call.1}
  #allocation0 [shape = 'u32[]', space=smem, size = 0x4, offset = 0x4, fixed_abs, tag = 'smem constant byte address 0x4 - core index']
  #allocation1 [shape = 'u32[144,128]{1,0:T(1,128)}', space=vmem, size = 0x12000, scoped, tag = 'internal scratch']
  %s0 = inlined_call_operand.vmem [shape: f32[512,1], index: 0, kind: input, shape index: {}]
  %s1 = inlined_call_operand.vmem [shape: f32[512,196], index: 1, kind: input, shape index: {}]
  %s2 = inlined_call_operand.vmem [shape: f32[512,196], index: 2, kind: output, shape index: {}]
  %s3 = sld [smem:[#allocation0]]
  $region41: #{tpu_custom_call.1} parent=0
    _
  %s5 = ssub.s32 1, %s3
  %s6 = scalar_select 0, %s5, %s3
  loop: start=0, step=1, limit=4
  $region2: #{tpu_custom_call.1} parent=0 // loop_pre_header
    _
  $region3: #{tpu_custom_call.1} parent=0 // loop_header
    %s8 = sphi 0, %s12
    %p9 = scmp.ge.s32.totalorder %s8, 4
    %s16 = sphi 0, %s16
    %s18 = sphi 0, %s16
    %s19 = sphi 0, %s18
    %s33 = sphi 0, %s19
    %s39 = sphi 0, %s41
    %s42 = sphi 0, %s39
    %s43 = sphi 0, %s42
    %s59 = sphi 0, %s43
    %s65 = sphi 0, %s67
    %s68 = sphi 0, %s65
    %s69 = sphi 0, %s68
    %s85 = sphi 0, %s69
  $region4: #{tpu_custom_call.1} parent=0 // loop_header_branch
    %11 = sbr.rel (%p9) target = $region8
  $region5: #{tpu_custom_call.1} parent=0 // loop_body
    %s13 = ssub.s32 %s8, 1
    %s14 = ssub.s32 %s8, 2
    %s15 = sadd.s32 %s8, 1
    %s17 = sadd.s32 %s16, 1
    %p20 = scmp.eq.s32.totalorder %s8, 1
    %p21 = scmp.ne.s32.totalorder %s16, %s18
    %p22 = scmp.eq.s32.totalorder %s8, 0
    %p23 = por %p21, %p22
    %p24 = scmp.ne.s32.totalorder %s16, %s18
    %p25 = scmp.eq.s32.totalorder %s13, 1
    %p26 = por %p24, %p25
    %p27 = scmp.ne.s32.totalorder %s18, %s19
    %p28 = scmp.eq.s32.totalorder %s13, 0
    %p29 = por %p27, %p28
    %p30 = scmp.ne.s32.totalorder %s18, %s19
    %p31 = scmp.eq.s32.totalorder %s14, 1
    %p32 = por %p30, %p31
    %p34 = scmp.ne.s32.totalorder %s19, %s33
    %p35 = scmp.eq.s32.totalorder %s14, 0
    %p36 = por %p34, %p35
    %s37 = ssub.s32 %s8, %s15
    %p38 = scmp.eq.s32.totalorder %s37, 0
    %s40 = sadd.s32 %s39, 1
    %s41 = scalar_select %p38, %s39, %s40
    %p44 = pneg %p38
    %p45 = scmp.eq.s32.totalorder %s8, 1
    %p46 = por %p44, %p45
    %p47 = scmp.ne.s32.totalorder %s39, %s42
    %p48 = scmp.eq.s32.totalorder %s8, 0
    %p49 = por %p47, %p48
    %p50 = scmp.ne.s32.totalorder %s39, %s42
    %p51 = scmp.eq.s32.totalorder %s13, 1
    %p52 = por %p50, %p51
    %p53 = scmp.ne.s32.totalorder %s42, %s43
    %p54 = scmp.eq.s32.totalorder %s13, 0
    %p55 = por %p53, %p54
    %p56 = scmp.ne.s32.totalorder %s42, %s43
    %p57 = scmp.eq.s32.totalorder %s14, 1
    %p58 = por %p56, %p57
    %p60 = scmp.ne.s32.totalorder %s43, %s59
    %p61 = scmp.eq.s32.totalorder %s14, 0
    %p62 = por %p60, %p61
    %s63 = ssub.s32 %s8, %s15
    %p64 = scmp.eq.s32.totalorder %s63, 0
    %s66 = sadd.s32 %s65, 1
    %s67 = scalar_select %p64, %s65, %s66
    %p70 = pneg %p64
    %p71 = scmp.eq.s32.totalorder %s8, 1
    %p72 = por %p70, %p71
    %p73 = scmp.ne.s32.totalorder %s65, %s68
    %p74 = scmp.eq.s32.totalorder %s8, 0
    %p75 = por %p73, %p74
    %p76 = scmp.ne.s32.totalorder %s65, %s68
    %p77 = scmp.eq.s32.totalorder %s13, 1
    %p78 = por %p76, %p77
    %p79 = scmp.ne.s32.totalorder %s68, %s69
    %p80 = scmp.eq.s32.totalorder %s13, 0
    %p81 = por %p79, %p80
    %p82 = scmp.ne.s32.totalorder %s68, %s69
    %p83 = scmp.eq.s32.totalorder %s14, 1
    %p84 = por %p82, %p83
    %p86 = scmp.ne.s32.totalorder %s69, %s85
    %p87 = scmp.eq.s32.totalorder %s14, 0
    %p88 = por %p86, %p87
    %p89 = scmp.le.s32.totalorder 1, %s8
    %p90 = scmp.lt.s32.totalorder %s8, 3
    %p91 = pnand %p89, %p90
    %p92 = pneg %p91
    // Predicated region
    $region9: #{tpu_custom_call.1} parent=5 // pred_check
      _
    $region10: #{tpu_custom_call.1} parent=5 // pred_check_branch
      %94 = sbr.rel (%p91) target = $region12
    $region11: #{tpu_custom_call.1} parent=5 // pred_region
      %s95 = ssub.s32 %s8, 1
      // Predicated region
      $region13: #{tpu_custom_call.1} parent=11 // pred_check
        %p96 = pneg %p29
      $region14: #{tpu_custom_call.1} parent=11 // pred_check_branch
        %98 = sbr.rel (%p96) target = $region16
      $region15: #{tpu_custom_call.1} parent=11 // pred_region
        _
      $region16: #{tpu_custom_call.1} parent=11 // pred_fallthru
        _
    $region12: #{tpu_custom_call.1} parent=5 // pred_fallthru
      _
    %p99 = scmp.lt.s32.totalorder %s8, 2
    // Predicated region
    $region17: #{tpu_custom_call.1} parent=5 // pred_check
      %p100 = pneg %p99
    $region18: #{tpu_custom_call.1} parent=5 // pred_check_branch
      %102 = sbr.rel (%p100) target = $region20
    $region19: #{tpu_custom_call.1} parent=5 // pred_region
      // Predicated region
      $region21: #{tpu_custom_call.1} parent=19 // pred_check
        %p103 = pneg %p49
      $region22: #{tpu_custom_call.1} parent=19 // pred_check_branch
        %105 = sbr.rel (%p103) target = $region24
      $region23: #{tpu_custom_call.1} parent=19 // pred_region
        %s106 = smul.u32 32, %s8
        %p107 = scmp.lt.s32.totalorder %s106, 63
        %s108 = scalar_select %p107, %s106, 63
        %s109 = smul.addr %s108, 2
        %s110 = smul.addr %s109, 8
        %s111 = scalar_lea.vmem %s1, %s110
        %s112 = smul.u32 32, %s8
      $region24: #{tpu_custom_call.1} parent=19 // pred_fallthru
        _
    $region20: #{tpu_custom_call.1} parent=5 // pred_fallthru
      _
    %p113 = scmp.le.s32.totalorder 1, %s8
    %p114 = scmp.lt.s32.totalorder %s8, 3
    %p115 = pnand %p113, %p114
    %p116 = pneg %p115
    // Predicated region
    $region25: #{tpu_custom_call.1} parent=5 // pred_check
      _
    $region26: #{tpu_custom_call.1} parent=5 // pred_check_branch
      %118 = sbr.rel (%p115) target = $region28
    $region27: #{tpu_custom_call.1} parent=5 // pred_region
      %s119 = ssub.s32 %s8, 1
      %p120 = pneg %p29
      %p121 = pneg %p26
      %s122 = smul.u32 32, %s13
      %p123 = scmp.lt.s32.totalorder %s122, 63
      %s124 = scalar_select %p123, %s122, 63
      %s125 = smul.addr %s124, 2
      %s126 = smul.addr %s125, 8
      %s127 = scalar_lea.vmem %s1, %s126
      %p128 = pneg %p55
      %p129 = pneg %p52
      %p130 = pneg %p81
      %p131 = pneg %p78
      %s132 = smul.u32 32, %s13
      %p133 = scmp.lt.s32.totalorder %s132, 63
      %s134 = scalar_select %p133, %s132, 63
      %s135 = smul.addr %s134, 2
      %s136 = smul.addr %s135, 8
      %s137 = scalar_lea.vmem %s2, %s136
      %s138 = smul.u32 32, %s13
      %p139 = scmp.lt.s32.totalorder %s138, 63
      %s140 = scalar_select %p139, %s138, 63
      %s141 = smul.addr %s140, 2
      %s142 = smul.addr %s141, 8
      %s143 = scalar_lea.vmem %s1, %s142
      %s144 = smul.u32 32, %s13
      %s145 = smul.u32 32, %s13
      %p146 = scmp.lt.s32.totalorder %s145, 63
      %s147 = scalar_select %p146, %s145, 63
      %s148 = smul.addr %s147, 2
      %s149 = smul.addr %s148, 8
      %s150 = scalar_lea.vmem %s2, %s149
      %s151 = smul.u32 32, %s13
      %s152 = smul.u32 %s13, 256
      %v153 = vld [vmem:[%s143] sm:$0xff]
      %v154 = vld [vmem:[%s143 + $0x8] sm:$0xff]
      %v155 = vld [vmem:[%s143 + $0x10] sm:$0xff]
      %v156 = vld [vmem:[%s143 + $0x18] sm:$0xff]
      %v157 = vld [vmem:[%s143 + $0x20] sm:$0xff]
      %v158 = vld [vmem:[%s143 + $0x28] sm:$0xff]
      %v159 = vld [vmem:[%s143 + $0x30] sm:$0xff]
      %v160 = vld [vmem:[%s143 + $0x38] sm:$0xff]
      %v161 = vld [vmem:[%s143 + $0x40] sm:$0xff]
      %v162 = vld [vmem:[%s143 + $0x48] sm:$0xff]
      %v163 = vld [vmem:[%s143 + $0x50] sm:$0xff]
      %v164 = vld [vmem:[%s143 + $0x58] sm:$0xff]
      %v165 = vld [vmem:[%s143 + $0x60] sm:$0xff]
      %v166 = vld [vmem:[%s143 + $0x68] sm:$0xff]
      %v167 = vld [vmem:[%s143 + $0x70] sm:$0xff]
      %v168 = vld [vmem:[%s143 + $0x78] sm:$0xff]
      %v169 = vld [vmem:[%s143 + $0x80] sm:$0xff]
      %v170 = vld [vmem:[%s143 + $0x88] sm:$0xff]
      %v171 = vld [vmem:[%s143 + $0x90] sm:$0xff]
      %v172 = vld [vmem:[%s143 + $0x98] sm:$0xff]
      %v173 = vld [vmem:[%s143 + $0xa0] sm:$0xff]
      %v174 = vld [vmem:[%s143 + $0xa8] sm:$0xff]
      %v175 = vld [vmem:[%s143 + $0xb0] sm:$0xff]
      %v176 = vld [vmem:[%s143 + $0xb8] sm:$0xff]
      %v177 = vld [vmem:[%s143 + $0xc0] sm:$0xff]
      %v178 = vld [vmem:[%s143 + $0xc8] sm:$0xff]
      %v179 = vld [vmem:[%s143 + $0xd0] sm:$0xff]
      %v180 = vld [vmem:[%s143 + $0xd8] sm:$0xff]
      %v181 = vld [vmem:[%s143 + $0xe0] sm:$0xff]
      %v182 = vld [vmem:[%s143 + $0xe8] sm:$0xff]
      %v183 = vld [vmem:[%s143 + $0xf0] sm:$0xff]
      %v184 = vld [vmem:[%s143 + $0xf8] sm:$0xff]
      %v185 = vld [vmem:[%s143 + $0x100] sm:$0xff]
      %v186 = vld [vmem:[%s143 + $0x108] sm:$0xff]
      %v187 = vld [vmem:[%s143 + $0x110] sm:$0xff]
      %v188 = vld [vmem:[%s143 + $0x118] sm:$0xff]
      %v189 = vld [vmem:[%s143 + $0x120] sm:$0xff]
      %v190 = vld [vmem:[%s143 + $0x128] sm:$0xff]
      %v191 = vld [vmem:[%s143 + $0x130] sm:$0xff]
      %v192 = vld [vmem:[%s143 + $0x138] sm:$0xff]
      %v193 = vld [vmem:[%s143 + $0x140] sm:$0xff]
      %v194 = vld [vmem:[%s143 + $0x148] sm:$0xff]
      %v195 = vld [vmem:[%s143 + $0x150] sm:$0xff]
      %v196 = vld [vmem:[%s143 + $0x158] sm:$0xff]
      %v197 = vld [vmem:[%s143 + $0x160] sm:$0xff]
      %v198 = vld [vmem:[%s143 + $0x168] sm:$0xff]
      %v199 = vld [vmem:[%s143 + $0x170] sm:$0xff]
      %v200 = vld [vmem:[%s143 + $0x178] sm:$0xff]
      %v201 = vld [vmem:[%s143 + $0x180] sm:$0xff]
      %v202 = vld [vmem:[%s143 + $0x188] sm:$0xff]
      %v203 = vld [vmem:[%s143 + $0x190] sm:$0xff]
      %v204 = vld [vmem:[%s143 + $0x198] sm:$0xff]
      %v205 = vld [vmem:[%s143 + $0x1a0] sm:$0xff]
      %v206 = vld [vmem:[%s143 + $0x1a8] sm:$0xff]
      %v207 = vld [vmem:[%s143 + $0x1b0] sm:$0xff]
      %v208 = vld [vmem:[%s143 + $0x1b8] sm:$0xff]
      %v209 = vld [vmem:[%s143 + $0x1c0] sm:$0xff]
      %v210 = vld [vmem:[%s143 + $0x1c8] sm:$0xff]
      %v211 = vld [vmem:[%s143 + $0x1d0] sm:$0xff]
      %v212 = vld [vmem:[%s143 + $0x1d8] sm:$0xff]
      %v213 = vld [vmem:[%s143 + $0x1e0] sm:$0xff]
      %v214 = vld [vmem:[%s143 + $0x1e8] sm:$0xff]
      %v215 = vld [vmem:[%s143 + $0x1f0] sm:$0xff]
      %v216 = vld [vmem:[%s143 + $0x1f8] sm:$0xff]
      %s217 = scalar_lea.vmem %s0, %s152
      %v218 = vld [vmem:[%s217] sm:$0xff]
      %v219 = vld [vmem:[%s217 + $0x8] sm:$0xff]
      %v220 = vld [vmem:[%s217 + $0x10] sm:$0xff]
      %v221 = vld [vmem:[%s217 + $0x18] sm:$0xff]
      %v222 = vld [vmem:[%s217 + $0x20] sm:$0xff]
      %v223 = vld [vmem:[%s217 + $0x28] sm:$0xff]
      %v224 = vld [vmem:[%s217 + $0x30] sm:$0xff]
      %v225 = vld [vmem:[%s217 + $0x38] sm:$0xff]
      %v226 = vld [vmem:[%s217 + $0x40] sm:$0xff]
      %v227 = vld [vmem:[%s217 + $0x48] sm:$0xff]
      %v228 = vld [vmem:[%s217 + $0x50] sm:$0xff]
      %v229 = vld [vmem:[%s217 + $0x58] sm:$0xff]
      %v230 = vld [vmem:[%s217 + $0x60] sm:$0xff]
      %v231 = vld [vmem:[%s217 + $0x68] sm:$0xff]
      %v232 = vld [vmem:[%s217 + $0x70] sm:$0xff]
      %v233 = vld [vmem:[%s217 + $0x78] sm:$0xff]
      %v234 = vld [vmem:[%s217 + $0x80] sm:$0xff]
      %v235 = vld [vmem:[%s217 + $0x88] sm:$0xff]
      %v236 = vld [vmem:[%s217 + $0x90] sm:$0xff]
      %v237 = vld [vmem:[%s217 + $0x98] sm:$0xff]
      %v238 = vld [vmem:[%s217 + $0xa0] sm:$0xff]
      %v239 = vld [vmem:[%s217 + $0xa8] sm:$0xff]
      %v240 = vld [vmem:[%s217 + $0xb0] sm:$0xff]
      %v241 = vld [vmem:[%s217 + $0xb8] sm:$0xff]
      %v242 = vld [vmem:[%s217 + $0xc0] sm:$0xff]
      %v243 = vld [vmem:[%s217 + $0xc8] sm:$0xff]
      %v244 = vld [vmem:[%s217 + $0xd0] sm:$0xff]
      %v245 = vld [vmem:[%s217 + $0xd8] sm:$0xff]
      %v246 = vld [vmem:[%s217 + $0xe0] sm:$0xff]
      %v247 = vld [vmem:[%s217 + $0xe8] sm:$0xff]
      %v248 = vld [vmem:[%s217 + $0xf0] sm:$0xff]
      %v249 = vld [vmem:[%s217 + $0xf8] sm:$0xff]
      %251 = vset.pattern.permute.xlu0 0
      %252 = vperm.xlu0 %251, %v218
      %v253 = vpop.permute.xlu0 %252
      %256 = vset.pattern.permute.xlu0 0
      %257 = vperm.xlu0 %256, %v219
      %v258 = vpop.permute.xlu0 %257
      %261 = vset.pattern.permute.xlu0 0
      %262 = vperm.xlu0 %261, %v220
      %v263 = vpop.permute.xlu0 %262
      %266 = vset.pattern.permute.xlu0 0
      %267 = vperm.xlu0 %266, %v221
      %v268 = vpop.permute.xlu0 %267
      %271 = vset.pattern.permute.xlu0 0
      %272 = vperm.xlu0 %271, %v222
      %v273 = vpop.permute.xlu0 %272
      %276 = vset.pattern.permute.xlu0 0
      %277 = vperm.xlu0 %276, %v223
      %v278 = vpop.permute.xlu0 %277
      %281 = vset.pattern.permute.xlu0 0
      %282 = vperm.xlu0 %281, %v224
      %v283 = vpop.permute.xlu0 %282
      %286 = vset.pattern.permute.xlu0 0
      %287 = vperm.xlu0 %286, %v225
      %v288 = vpop.permute.xlu0 %287
      %291 = vset.pattern.permute.xlu0 0
      %292 = vperm.xlu0 %291, %v226
      %v293 = vpop.permute.xlu0 %292
      %296 = vset.pattern.permute.xlu0 0
      %297 = vperm.xlu0 %296, %v227
      %v298 = vpop.permute.xlu0 %297
      %301 = vset.pattern.permute.xlu0 0
      %302 = vperm.xlu0 %301, %v228
      %v303 = vpop.permute.xlu0 %302
      %306 = vset.pattern.permute.xlu0 0
      %307 = vperm.xlu0 %306, %v229
      %v308 = vpop.permute.xlu0 %307
      %311 = vset.pattern.permute.xlu0 0
      %312 = vperm.xlu0 %311, %v230
      %v313 = vpop.permute.xlu0 %312
      %316 = vset.pattern.permute.xlu0 0
      %317 = vperm.xlu0 %316, %v231
      %v318 = vpop.permute.xlu0 %317
      %321 = vset.pattern.permute.xlu0 0
      %322 = vperm.xlu0 %321, %v232
      %v323 = vpop.permute.xlu0 %322
      %326 = vset.pattern.permute.xlu0 0
      %327 = vperm.xlu0 %326, %v233
      %v328 = vpop.permute.xlu0 %327
      %331 = vset.pattern.permute.xlu0 0
      %332 = vperm.xlu0 %331, %v234
      %v333 = vpop.permute.xlu0 %332
      %336 = vset.pattern.permute.xlu0 0
      %337 = vperm.xlu0 %336, %v235
      %v338 = vpop.permute.xlu0 %337
      %341 = vset.pattern.permute.xlu0 0
      %342 = vperm.xlu0 %341, %v236
      %v343 = vpop.permute.xlu0 %342
      %346 = vset.pattern.permute.xlu0 0
      %347 = vperm.xlu0 %346, %v237
      %v348 = vpop.permute.xlu0 %347
      %351 = vset.pattern.permute.xlu0 0
      %352 = vperm.xlu0 %351, %v238
      %v353 = vpop.permute.xlu0 %352
      %356 = vset.pattern.permute.xlu0 0
      %357 = vperm.xlu0 %356, %v239
      %v358 = vpop.permute.xlu0 %357
      %361 = vset.pattern.permute.xlu0 0
      %362 = vperm.xlu0 %361, %v240
      %v363 = vpop.permute.xlu0 %362
      %366 = vset.pattern.permute.xlu0 0
      %367 = vperm.xlu0 %366, %v241
      %v368 = vpop.permute.xlu0 %367
      %371 = vset.pattern.permute.xlu0 0
      %372 = vperm.xlu0 %371, %v242
      %v373 = vpop.permute.xlu0 %372
      %376 = vset.pattern.permute.xlu0 0
      %377 = vperm.xlu0 %376, %v243
      %v378 = vpop.permute.xlu0 %377
      %381 = vset.pattern.permute.xlu0 0
      %382 = vperm.xlu0 %381, %v244
      %v383 = vpop.permute.xlu0 %382
      %386 = vset.pattern.permute.xlu0 0
      %387 = vperm.xlu0 %386, %v245
      %v388 = vpop.permute.xlu0 %387
      %391 = vset.pattern.permute.xlu0 0
      %392 = vperm.xlu0 %391, %v246
      %v393 = vpop.permute.xlu0 %392
      %396 = vset.pattern.permute.xlu0 0
      %397 = vperm.xlu0 %396, %v247
      %v398 = vpop.permute.xlu0 %397
      %401 = vset.pattern.permute.xlu0 0
      %402 = vperm.xlu0 %401, %v248
      %v403 = vpop.permute.xlu0 %402
      %406 = vset.pattern.permute.xlu0 0
      %407 = vperm.xlu0 %406, %v249
      %v408 = vpop.permute.xlu0 %407
      %v410 = vmul.f32 %v153, %v253
      %v411 = vmul.f32 %v154, %v253
      %v412 = vmul.f32 %v155, %v258
      %v413 = vmul.f32 %v156, %v258
      %v414 = vmul.f32 %v157, %v263
      %v415 = vmul.f32 %v158, %v263
      %v416 = vmul.f32 %v159, %v268
      %v417 = vmul.f32 %v160, %v268
      %v418 = vmul.f32 %v161, %v273
      %v419 = vmul.f32 %v162, %v273
      %v420 = vmul.f32 %v163, %v278
      %v421 = vmul.f32 %v164, %v278
      %v422 = vmul.f32 %v165, %v283
      %v423 = vmul.f32 %v166, %v283
      %v424 = vmul.f32 %v167, %v288
      %v425 = vmul.f32 %v168, %v288
      %v426 = vmul.f32 %v169, %v293
      %v427 = vmul.f32 %v170, %v293
      %v428 = vmul.f32 %v171, %v298
      %v429 = vmul.f32 %v172, %v298
      %v430 = vmul.f32 %v173, %v303
      %v431 = vmul.f32 %v174, %v303
      %v432 = vmul.f32 %v175, %v308
      %v433 = vmul.f32 %v176, %v308
      %v434 = vmul.f32 %v177, %v313
      %v435 = vmul.f32 %v178, %v313
      %v436 = vmul.f32 %v179, %v318
      %v437 = vmul.f32 %v180, %v318
      %v438 = vmul.f32 %v181, %v323
      %v439 = vmul.f32 %v182, %v323
      %v440 = vmul.f32 %v183, %v328
      %v441 = vmul.f32 %v184, %v328
      %v442 = vmul.f32 %v185, %v333
      %v443 = vmul.f32 %v186, %v333
      %v444 = vmul.f32 %v187, %v338
      %v445 = vmul.f32 %v188, %v338
      %v446 = vmul.f32 %v189, %v343
      %v447 = vmul.f32 %v190, %v343
      %v448 = vmul.f32 %v191, %v348
      %v449 = vmul.f32 %v192, %v348
      %v450 = vmul.f32 %v193, %v353
      %v451 = vmul.f32 %v194, %v353
      %v452 = vmul.f32 %v195, %v358
      %v453 = vmul.f32 %v196, %v358
      %v454 = vmul.f32 %v197, %v363
      %v455 = vmul.f32 %v198, %v363
      %v456 = vmul.f32 %v199, %v368
      %v457 = vmul.f32 %v200, %v368
      %v458 = vmul.f32 %v201, %v373
      %v459 = vmul.f32 %v202, %v373
      %v460 = vmul.f32 %v203, %v378
      %v461 = vmul.f32 %v204, %v378
      %v462 = vmul.f32 %v205, %v383
      %v463 = vmul.f32 %v206, %v383
      %v464 = vmul.f32 %v207, %v388
      %v465 = vmul.f32 %v208, %v388
      %v466 = vmul.f32 %v209, %v393
      %v467 = vmul.f32 %v210, %v393
      %v468 = vmul.f32 %v211, %v398
      %v469 = vmul.f32 %v212, %v398
      %v470 = vmul.f32 %v213, %v403
      %v471 = vmul.f32 %v214, %v403
      %v472 = vmul.f32 %v215, %v408
      %v473 = vmul.f32 %v216, %v408
      %474 = vst [vmem:[%s150] sm:$0xff] %v410
      %vm475 = vcmask 556032
      %476 = vst.msk [vmem:[%s150 + $0x8] sm:$0xff] %vm475, %v411
      %477 = vst [vmem:[%s150 + $0x10] sm:$0xff] %v412
      %478 = vst.msk [vmem:[%s150 + $0x18] sm:$0xff] %vm475, %v413
      %479 = vst [vmem:[%s150 + $0x20] sm:$0xff] %v414
      %480 = vst.msk [vmem:[%s150 + $0x28] sm:$0xff] %vm475, %v415
      %481 = vst [vmem:[%s150 + $0x30] sm:$0xff] %v416
      %482 = vst.msk [vmem:[%s150 + $0x38] sm:$0xff] %vm475, %v417
      %483 = vst [vmem:[%s150 + $0x40] sm:$0xff] %v418
      %484 = vst.msk [vmem:[%s150 + $0x48] sm:$0xff] %vm475, %v419
      %485 = vst [vmem:[%s150 + $0x50] sm:$0xff] %v420
      %486 = vst.msk [vmem:[%s150 + $0x58] sm:$0xff] %vm475, %v421
      %487 = vst [vmem:[%s150 + $0x60] sm:$0xff] %v422
      %488 = vst.msk [vmem:[%s150 + $0x68] sm:$0xff] %vm475, %v423
      %489 = vst [vmem:[%s150 + $0x70] sm:$0xff] %v424
      %490 = vst.msk [vmem:[%s150 + $0x78] sm:$0xff] %vm475, %v425
      %491 = vst [vmem:[%s150 + $0x80] sm:$0xff] %v426
      %492 = vst.msk [vmem:[%s150 + $0x88] sm:$0xff] %vm475, %v427
      %493 = vst [vmem:[%s150 + $0x90] sm:$0xff] %v428
      %494 = vst.msk [vmem:[%s150 + $0x98] sm:$0xff] %vm475, %v429
      %495 = vst [vmem:[%s150 + $0xa0] sm:$0xff] %v430
      %496 = vst.msk [vmem:[%s150 + $0xa8] sm:$0xff] %vm475, %v431
      %497 = vst [vmem:[%s150 + $0xb0] sm:$0xff] %v432
      %498 = vst.msk [vmem:[%s150 + $0xb8] sm:$0xff] %vm475, %v433
      %499 = vst [vmem:[%s150 + $0xc0] sm:$0xff] %v434
      %500 = vst.msk [vmem:[%s150 + $0xc8] sm:$0xff] %vm475, %v435
      %501 = vst [vmem:[%s150 + $0xd0] sm:$0xff] %v436
      %502 = vst.msk [vmem:[%s150 + $0xd8] sm:$0xff] %vm475, %v437
      %503 = vst [vmem:[%s150 + $0xe0] sm:$0xff] %v438
      %504 = vst.msk [vmem:[%s150 + $0xe8] sm:$0xff] %vm475, %v439
      %505 = vst [vmem:[%s150 + $0xf0] sm:$0xff] %v440
      %506 = vst.msk [vmem:[%s150 + $0xf8] sm:$0xff] %vm475, %v441
      %507 = vst [vmem:[%s150 + $0x100] sm:$0xff] %v442
      %508 = vst.msk [vmem:[%s150 + $0x108] sm:$0xff] %vm475, %v443
      %509 = vst [vmem:[%s150 + $0x110] sm:$0xff] %v444
      %510 = vst.msk [vmem:[%s150 + $0x118] sm:$0xff] %vm475, %v445
      %511 = vst [vmem:[%s150 + $0x120] sm:$0xff] %v446
      %512 = vst.msk [vmem:[%s150 + $0x128] sm:$0xff] %vm475, %v447
      %513 = vst [vmem:[%s150 + $0x130] sm:$0xff] %v448
      %514 = vst.msk [vmem:[%s150 + $0x138] sm:$0xff] %vm475, %v449
      %515 = vst [vmem:[%s150 + $0x140] sm:$0xff] %v450
      %516 = vst.msk [vmem:[%s150 + $0x148] sm:$0xff] %vm475, %v451
      %517 = vst [vmem:[%s150 + $0x150] sm:$0xff] %v452
      %518 = vst.msk [vmem:[%s150 + $0x158] sm:$0xff] %vm475, %v453
      %519 = vst [vmem:[%s150 + $0x160] sm:$0xff] %v454
      %520 = vst.msk [vmem:[%s150 + $0x168] sm:$0xff] %vm475, %v455
      %521 = vst [vmem:[%s150 + $0x170] sm:$0xff] %v456
      %522 = vst.msk [vmem:[%s150 + $0x178] sm:$0xff] %vm475, %v457
      %523 = vst [vmem:[%s150 + $0x180] sm:$0xff] %v458
      %524 = vst.msk [vmem:[%s150 + $0x188] sm:$0xff] %vm475, %v459
      %525 = vst [vmem:[%s150 + $0x190] sm:$0xff] %v460
      %526 = vst.msk [vmem:[%s150 + $0x198] sm:$0xff] %vm475, %v461
      %527 = vst [vmem:[%s150 + $0x1a0] sm:$0xff] %v462
      %528 = vst.msk [vmem:[%s150 + $0x1a8] sm:$0xff] %vm475, %v463
      %529 = vst [vmem:[%s150 + $0x1b0] sm:$0xff] %v464
      %530 = vst.msk [vmem:[%s150 + $0x1b8] sm:$0xff] %vm475, %v465
      %531 = vst [vmem:[%s150 + $0x1c0] sm:$0xff] %v466
      %532 = vst.msk [vmem:[%s150 + $0x1c8] sm:$0xff] %vm475, %v467
      %533 = vst [vmem:[%s150 + $0x1d0] sm:$0xff] %v468
      %534 = vst.msk [vmem:[%s150 + $0x1d8] sm:$0xff] %vm475, %v469
      %535 = vst [vmem:[%s150 + $0x1e0] sm:$0xff] %v470
      %536 = vst.msk [vmem:[%s150 + $0x1e8] sm:$0xff] %vm475, %v471
      %537 = vst [vmem:[%s150 + $0x1f0] sm:$0xff] %v472
      %538 = vst.msk [vmem:[%s150 + $0x1f8] sm:$0xff] %vm475, %v473
      %s539 = smul.u32 32, %s13
      %p540 = scmp.lt.s32.totalorder %s539, 63
      %s541 = scalar_select %p540, %s539, 63
      %s542 = smul.addr %s541, 2
      %s543 = smul.addr %s542, 8
      %s544 = scalar_lea.vmem %s2, %s543
      // Predicated region
      $region29: #{tpu_custom_call.1} parent=27 // pred_check
        %p545 = pneg %p78
      $region30: #{tpu_custom_call.1} parent=27 // pred_check_branch
        %547 = sbr.rel (%p545) target = $region32
      $region31: #{tpu_custom_call.1} parent=27 // pred_region
        %s548 = smul.u32 32, %s13
      $region32: #{tpu_custom_call.1} parent=27 // pred_fallthru
        _
    $region28: #{tpu_custom_call.1} parent=5 // pred_fallthru
      _
    %p549 = scmp.le.s32.totalorder 2, %s8
    // Predicated region
    $region33: #{tpu_custom_call.1} parent=5 // pred_check
      %p550 = pneg %p549
    $region34: #{tpu_custom_call.1} parent=5 // pred_check_branch
      %552 = sbr.rel (%p550) target = $region36
    $region35: #{tpu_custom_call.1} parent=5 // pred_region
      %s553 = ssub.s32 %s8, 2
      // Predicated region
      $region37: #{tpu_custom_call.1} parent=35 // pred_check
        %p554 = pneg %p84
      $region38: #{tpu_custom_call.1} parent=35 // pred_check_branch
        %556 = sbr.rel (%p554) target = $region40
      $region39: #{tpu_custom_call.1} parent=35 // pred_region
        %s557 = smul.u32 32, %s14
        %p558 = scmp.lt.s32.totalorder %s557, 63
        %s559 = scalar_select %p558, %s557, 63
        %s560 = smul.addr %s559, 2
        %s561 = smul.addr %s560, 8
        %s562 = scalar_lea.vmem %s2, %s561
      $region40: #{tpu_custom_call.1} parent=35 // pred_fallthru
        _
    $region36: #{tpu_custom_call.1} parent=5 // pred_fallthru
      _
  $region6: #{tpu_custom_call.1} parent=0 // loop_footer
    %s12 = sadd.s32 1, %s8
  $region7: #{tpu_custom_call.1} parent=0 // loop_footer_branch
    %7 = sbr.rel target = $region3
  $region8: #{tpu_custom_call.1} parent=0 // loop_exit
    _

</llo_original>
